<compile_context>
chip_gen: v6e
topology: v6e:2x2x1
jax: 0.10.0
libtpu: 0.0.40
codegen_flags: <defaults>
</compile_context>

<pallas_src>
import functools

import jax
import jax.numpy as jnp
import numpy as np
from jax.experimental import pallas as pl
from jax.experimental.pallas import tpu as pltpu

_LANES = 128
_SUBLANES = 8


def _cdiv(a: int, b: int) -> int:
    return -(-a // b)


def _round_up(a: int, b: int) -> int:
    return _cdiv(a, b) * b


def _default_ncore() -> int:
    try:
        kind = jax.devices()[0].device_kind.lower()
    except Exception:
        return 1
    # Only v7x has 2 TensorCores per chip sharing "parallel" grid axes.
    return 2 if ("v7" in kind or "7x" in kind) else 1


def _dfl_kernel(x_ref, t_ref, out_ref, *, n_valid, tiles_per_chunk, num_tiles,
                need_mask):
    """Streaming reduction over (tile_r, 128) row tiles.

    out_ref is a (3, 8, 128) f32 block resident across the reduction axis:
      out_ref[0] += partials of sum(t)
      out_ref[1] += partials of sum(t * sigmoid(x))
      out_ref[2] += partials of sum(exp(sigmoid(x)))
    """
    i = pl.program_id(1)

    @pl.when(i == 0)
    def _init():
        out_ref[...] = jnp.zeros_like(out_ref)

    tile_r, lanes = x_ref.shape
    tile_elems = tile_r * lanes
    g = pl.program_id(0) * tiles_per_chunk + i          # global tile index

    def accumulate(masked):
        x = x_ref[...].astype(jnp.float32)
        t = t_ref[...].astype(jnp.float32)
        # sigmoid via tanh: one EUP op (+2 VPU ops) instead of exp + reciprocal.
        s = 0.5 * jnp.tanh(0.5 * x) + 0.5
        e = jnp.exp(s)                                   # 2nd (and last) EUP op
        st = s * t
        if masked:
            # Zero every lane whose flat element index is >= n_valid.  Covers the
            # <128 zero-pad tail, rows past the array end in a partial last block
            # (undefined DMA contents), and clamped overrun tiles.
            row = jax.lax.broadcasted_iota(jnp.int32, x.shape, 0)
            lane = jax.lax.broadcasted_iota(jnp.int32, x.shape, 1)
            idx = g * tile_elems + row * lanes + lane
            valid = idx < n_valid
            zero = jnp.zeros_like(x)
            t = jnp.where(valid, t, zero)
            st = jnp.where(valid, st, zero)
            e = jnp.where(valid, e, zero)

        def fold(v):
            # (tile_r, 128) -> (8, 128) vreg tree-reduce, layout-preserving.
            return v.reshape(tile_r // _SUBLANES, _SUBLANES, lanes).sum(axis=0)

        out_ref[0] += fold(t)
        out_ref[1] += fold(st)
        out_ref[2] += fold(e)

    if need_mask:
        @pl.when(g >= num_tiles - 1)
        def _tail():
            accumulate(True)

        @pl.when(g < num_tiles - 1)
        def _full():
            accumulate(False)
    else:
        accumulate(False)


def dice_focal_loss(inputs, targets, smooth: float = 1.0, *,
                    max_tile_rows: int = 1024, ncore=None):
    """Pallas implementation of DiceFocalLoss.forward (returns dict(cls_loss=...))."""
    del smooth  # only feeds the dice path, which the original module discards

    x = inputs.reshape(-1)   # native dtype (bf16 etc. halves HBM bytes); kernel upcasts
    t = targets.reshape(-1)
    n = int(x.shape[0])

    # A (rows, 128) view is a free reshape when n % 128 == 0 (the common case).
    n_view = _round_up(n, _LANES)
    rows = n_view // _LANES
    if rows < _SUBLANES:                     # tiny inputs: one full (8,128) tile
        n_view = _SUBLANES * _LANES
        rows = _SUBLANES
    if n_view != n:
        # TODO(synk): unavoidable copy when numel % 128 != 0; pad values are
        # masked out inside the kernel, so plain zeros are fine.
        x = jnp.pad(x, (0, n_view - n))
        t = jnp.pad(t, (0, n_view - n))
    xp = x.reshape(rows, _LANES)
    tp = t.reshape(rows, _LANES)

    tile_r = min(max_tile_rows, (rows // _SUBLANES) * _SUBLANES)
    num_tiles = _cdiv(rows, tile_r)

    if ncore is None:
        ncore = _default_ncore()
    ncore = max(1, min(int(ncore), num_tiles))
    tiles_per_chunk = _cdiv(num_tiles, ncore)
    grid_tiles = ncore * tiles_per_chunk                       # >= num_tiles
    need_mask = (grid_tiles * tile_r * _LANES) != n            # tail / partial / overrun

    if grid_tiles > num_tiles:
        # ncore does not divide num_tiles: clamp overrun steps onto the last
        # valid tile; their contribution is masked to zero inside the kernel.
        def in_map(c, i):
            return (jnp.minimum(c * tiles_per_chunk + i, num_tiles - 1), 0)
    else:
        def in_map(c, i):
            return (c * tiles_per_chunk + i, 0)

    kernel = functools.partial(_dfl_kernel, n_valid=n,
                               tiles_per_chunk=tiles_per_chunk,
                               num_tiles=num_tiles, need_mask=need_mask)

    partials = pl.pallas_call(
        kernel,
        grid_spec=pl.GridSpec(
            grid=(ncore, tiles_per_chunk),
            in_specs=[pl.BlockSpec((tile_r, _LANES), in_map),
                      pl.BlockSpec((tile_r, _LANES), in_map)],
            out_specs=pl.BlockSpec((3, _SUBLANES, _LANES), lambda c, i: (c, 0, 0)),
        ),
        out_shape=jax.ShapeDtypeStruct((3 * ncore, _SUBLANES, _LANES), jnp.float32),
        compiler_params=pltpu.CompilerParams(
            dimension_semantics=("parallel", "arbitrary")),
    )(xp, tp)

    # Tiny epilogue in XLA: combine per-chunk (8,128) partial blocks.
    sums = partials.reshape(ncore, 3, _SUBLANES * _LANES).sum(axis=(0, 2))
    sum_t, inter, sum_exp = sums[0], sums[1], sums[2]

    # Soft-label cross entropy over the flat vector (one "sample" of n classes).
    # s = sigmoid(x) in (0,1)  =>  log(sum(exp(s))) needs no max shift.
    cls_loss = sum_t * jnp.log(sum_exp) - inter

    # NOTE: the PyTorch module also computes dice_loss but never returns it
    # (dead code), so it is intentionally not computed here.
    return dict(cls_loss=cls_loss)


def _reference(inputs, targets):
    # Plain-JAX reproduction of the PyTorch forward (cls_loss only).
    s = jax.nn.sigmoid(inputs.reshape(-1).astype(jnp.float32))
    t = targets.reshape(-1).astype(jnp.float32)
    lse = jax.scipy.special.logsumexp(s)
    return jnp.sum(t) * lse - jnp.sum(t * s)


if __name__ == "__main__":
    key = jax.random.PRNGKey(0)

    # Primary example: NCHW logits + 0/1 segmentation-style targets (2048 elems,
    # multiple of 128 -> zero-copy fast path, no in-kernel masking emitted).
    k1, k2 = jax.random.split(key)
    x = jax.random.normal(k1, (2, 4, 16, 16), dtype=jnp.float32)
    t = jax.random.bernoulli(k2, 0.3, (2, 4, 16, 16)).astype(jnp.float32)
    out = dice_focal_loss(x, t, smooth=1.0)
    cls = jax.block_until_ready(out["cls_loss"])
    ref = np.asarray(_reference(x, t))
    assert np.allclose(np.asarray(cls), ref, rtol=1e-5, atol=1e-5), (cls, ref)

    # Ragged shape (4800 elems): exercises the in-kernel tail mask and a
    # partial last tile across a 2-tile reduction grid.
    k3, k4 = jax.random.split(k2)
    x2 = jax.random.normal(k3, (3, 1, 40, 40), dtype=jnp.float32)
    t2 = jax.random.bernoulli(k4, 0.3, (3, 1, 40, 40)).astype(jnp.float32)
    out2 = dice_focal_loss(x2, t2)
    cls2 = jax.block_until_ready(out2["cls_loss"])
    ref2 = np.asarray(_reference(x2, t2))
    assert np.allclose(np.asarray(cls2), ref2, rtol=1e-5, atol=1e-5), (cls2, ref2)

    print("KERNEL_OK")
</pallas_src>

<mosaic_0001>
module attributes {stable_mosaic.version = 11 : i64} {
  func.func @_dfl_kernel(%arg0: i32, %arg1: i32, %arg2: memref<16x128xf32, #tpu.memory_space<vmem>>, %arg3: memref<16x128xf32, #tpu.memory_space<vmem>>, %arg4: memref<3x8x128xf32, #tpu.memory_space<vmem>>) attributes {dimension_semantics = [#tpu.dimension_semantics<parallel>, #tpu.dimension_semantics<arbitrary>], iteration_bounds = array<i64: 1, 1>, scalar_prefetch = 0 : i64, scratch_operands = 0 : i64, tpu.core_type = #tpu.core_type<tc>, window_params = [{transform_indices = @transform_0, window_bounds = array<i64: 16, 128>}, {transform_indices = @transform_1, window_bounds = array<i64: 16, 128>}, {transform_indices = @transform_2, window_bounds = array<i64: 3, 8, 128>}]} {
    %c0_i32 = arith.constant 0 : i32
    %0 = arith.cmpi eq, %arg1, %c0_i32 : i32
    %1 = arith.extui %0 : i1 to i32
    %c0_i32_0 = arith.constant 0 : i32
    %2 = arith.cmpi ne, %1, %c0_i32_0 : i32
    scf.if %2 {
      %cst_25 = arith.constant 0.000000e+00 : f32
      %38 = vector.broadcast %cst_25 : f32 to vector<3x8x128xf32>
      %c0_26 = arith.constant 0 : index
      %c0_27 = arith.constant 0 : index
      %c0_28 = arith.constant 0 : index
      %39 = vector.load %arg4[%c0_26, %c0_27, %c0_28] : memref<3x8x128xf32, #tpu.memory_space<vmem>>, vector<3x8x128xf32>
      tpu.vector_store %arg4[%c0_26, %c0_27, %c0_28], %38 {strides = array<i32>} : memref<3x8x128xf32, #tpu.memory_space<vmem>>, vector<3x8x128xf32>,
    } else {
    }
    %c0 = arith.constant 0 : index
    %c0_1 = arith.constant 0 : index
    %3 = vector.load %arg2[%c0, %c0_1] : memref<16x128xf32, #tpu.memory_space<vmem>>, vector<16x128xf32>
    %c0_2 = arith.constant 0 : index
    %c0_3 = arith.constant 0 : index
    %4 = vector.load %arg3[%c0_2, %c0_3] : memref<16x128xf32, #tpu.memory_space<vmem>>, vector<16x128xf32>
    %cst = arith.constant 5.000000e-01 : f32
    %5 = vector.broadcast %cst : f32 to vector<16x128xf32>
    %6 = arith.mulf %5, %3 : vector<16x128xf32>
    %7 = math.tanh %6 : vector<16x128xf32>
    %cst_4 = arith.constant 5.000000e-01 : f32
    %8 = vector.broadcast %cst_4 : f32 to vector<16x128xf32>
    %9 = arith.mulf %8, %7 : vector<16x128xf32>
    %cst_5 = arith.constant 5.000000e-01 : f32
    %10 = vector.broadcast %cst_5 : f32 to vector<16x128xf32>
    %11 = arith.addf %9, %10 : vector<16x128xf32>
    %12 = math.exp %11 : vector<16x128xf32>
    %13 = arith.mulf %11, %4 : vector<16x128xf32>
    %c0_6 = arith.constant 0 : index
    %c0_7 = arith.constant 0 : index
    %c0_8 = arith.constant 0 : index
    %14 = vector.load %arg4[%c0_6, %c0_7, %c0_8] : memref<3x8x128xf32, #tpu.memory_space<vmem>>, vector<1x8x128xf32>
    %15 = vector.shape_cast %14 : vector<1x8x128xf32> to vector<8x128xf32>
    %16 = vector.shape_cast %4 : vector<16x128xf32> to vector<2x8x128xf32>
    %cst_9 = arith.constant dense<0.000000e+00> : vector<8x128xf32>
    %17 = vector.multi_reduction <add>, %16, %cst_9 [0] : vector<2x8x128xf32> to vector<8x128xf32>
    %18 = arith.addf %15, %17 : vector<8x128xf32>
    %c0_10 = arith.constant 0 : index
    %c0_11 = arith.constant 0 : index
    %c0_12 = arith.constant 0 : index
    %19 = vector.load %arg4[%c0_10, %c0_11, %c0_12] : memref<3x8x128xf32, #tpu.memory_space<vmem>>, vector<1x8x128xf32>
    %20 = vector.shape_cast %19 : vector<1x8x128xf32> to vector<8x128xf32>
    %21 = vector.shape_cast %18 : vector<8x128xf32> to vector<1x8x128xf32>
    tpu.vector_store %arg4[%c0_10, %c0_11, %c0_12], %21 {strides = array<i32>} : memref<3x8x128xf32, #tpu.memory_space<vmem>>, vector<1x8x128xf32>,
    %c1 = arith.constant 1 : index
    %c0_13 = arith.constant 0 : index
    %c0_14 = arith.constant 0 : index
    %22 = vector.load %arg4[%c1, %c0_13, %c0_14] : memref<3x8x128xf32, #tpu.memory_space<vmem>>, vector<1x8x128xf32>
    %23 = vector.shape_cast %22 : vector<1x8x128xf32> to vector<8x128xf32>
    %24 = vector.shape_cast %13 : vector<16x128xf32> to vector<2x8x128xf32>
    %cst_15 = arith.constant dense<0.000000e+00> : vector<8x128xf32>
    %25 = vector.multi_reduction <add>, %24, %cst_15 [0] : vector<2x8x128xf32> to vector<8x128xf32>
    %26 = arith.addf %23, %25 : vector<8x128xf32>
    %c1_16 = arith.constant 1 : index
    %c0_17 = arith.constant 0 : index
    %c0_18 = arith.constant 0 : index
    %27 = vector.load %arg4[%c1_16, %c0_17, %c0_18] : memref<3x8x128xf32, #tpu.memory_space<vmem>>, vector<1x8x128xf32>
    %28 = vector.shape_cast %27 : vector<1x8x128xf32> to vector<8x128xf32>
    %29 = vector.shape_cast %26 : vector<8x128xf32> to vector<1x8x128xf32>
    tpu.vector_store %arg4[%c1_16, %c0_17, %c0_18], %29 {strides = array<i32>} : memref<3x8x128xf32, #tpu.memory_space<vmem>>, vector<1x8x128xf32>,
    %c2 = arith.constant 2 : index
    %c0_19 = arith.constant 0 : index
    %c0_20 = arith.constant 0 : index
    %30 = vector.load %arg4[%c2, %c0_19, %c0_20] : memref<3x8x128xf32, #tpu.memory_space<vmem>>, vector<1x8x128xf32>
    %31 = vector.shape_cast %30 : vector<1x8x128xf32> to vector<8x128xf32>
    %32 = vector.shape_cast %12 : vector<16x128xf32> to vector<2x8x128xf32>
    %cst_21 = arith.constant dense<0.000000e+00> : vector<8x128xf32>
    %33 = vector.multi_reduction <add>, %32, %cst_21 [0] : vector<2x8x128xf32> to vector<8x128xf32>
    %34 = arith.addf %31, %33 : vector<8x128xf32>
    %c2_22 = arith.constant 2 : index
    %c0_23 = arith.constant 0 : index
    %c0_24 = arith.constant 0 : index
    %35 = vector.load %arg4[%c2_22, %c0_23, %c0_24] : memref<3x8x128xf32, #tpu.memory_space<vmem>>, vector<1x8x128xf32>
    %36 = vector.shape_cast %35 : vector<1x8x128xf32> to vector<8x128xf32>
    %37 = vector.shape_cast %34 : vector<8x128xf32> to vector<1x8x128xf32>
    tpu.vector_store %arg4[%c2_22, %c0_23, %c0_24], %37 {strides = array<i32>} : memref<3x8x128xf32, #tpu.memory_space<vmem>>, vector<1x8x128xf32>,
    return
  }
  func.func @transform_0(%arg0: i32, %arg1: i32) -> (i32, i32) {
    %c1_i32 = arith.constant 1 : i32
    %0 = arith.muli %arg0, %c1_i32 : i32
    %1 = arith.addi %0, %arg1 : i32
    %c0_i32 = arith.constant 0 : i32
    %c0_i32_0 = arith.constant 0 : i32
    return %1, %c0_i32 : i32, i32
  }
  func.func @transform_1(%arg0: i32, %arg1: i32) -> (i32, i32) {
    %c1_i32 = arith.constant 1 : i32
    %0 = arith.muli %arg0, %c1_i32 : i32
    %1 = arith.addi %0, %arg1 : i32
    %c0_i32 = arith.constant 0 : i32
    %c0_i32_0 = arith.constant 0 : i32
    return %1, %c0_i32 : i32, i32
  }
  func.func @transform_2(%arg0: i32, %arg1: i32) -> (i32, i32, i32) {
    %c0_i32 = arith.constant 0 : i32
    %c0_i32_0 = arith.constant 0 : i32
    %c0_i32_1 = arith.constant 0 : i32
    return %arg0, %c0_i32, %c0_i32_0 : i32, i32, i32
  }
}

</mosaic_0001>

<llo_original>
// kernel: tpu_custom_call.1
$region0: #{tpu_custom_call.1}
  #allocation0 [shape = 'u32[]', space=smem, size = 0x4, offset = 0x4, fixed_abs, tag = 'smem constant byte address 0x4 - core index']
  #allocation1 [shape = 'u32[144,128]{1,0:T(1,128)}', space=vmem, size = 0x12000, scoped, tag = 'internal scratch']
  %s0 = inlined_call_operand.hbm [shape: f32[16,128], index: 0, kind: input, shape index: {}]
  %s1 = inlined_call_operand.hbm [shape: f32[16,128], index: 1, kind: input, shape index: {}]
  %s2 = inlined_call_operand.hbm [shape: f32[3,8,128], index: 2, kind: output, shape index: {}]
  %s3 = sld [smem:[#allocation0]]
  $region30: #{tpu_custom_call.1} parent=0
    _
  %s5 = ssub.s32 1, %s3
  %s6 = scalar_select 0, %s5, %s3
  $region1: #{tpu_custom_call.1} parent=0
    #allocation2 [shape = 'u8[8192]{0}', space=vmem, size = 0x2000, scoped, tag = 'input window, operand 0, single buffered']
    #allocation3 [shape = 's32[1]{0}', space=sflag, size = 0x4, scoped, tag = 'scoped memory for tpu_custom_call.1']
    #allocation4 [shape = 's32[1]{0}', space=sflag, size = 0x4, scoped, tag = 'scoped memory for tpu_custom_call.1']
    #allocation5 [shape = 'u8[8192]{0}', space=vmem, size = 0x2000, scoped, tag = 'input window, operand 1, single buffered']
    #allocation6 [shape = 's32[1]{0}', space=sflag, size = 0x4, scoped, tag = 'scoped memory for tpu_custom_call.1']
    #allocation7 [shape = 'u8[12288]{0}', space=vmem, size = 0x3000, scoped, tag = 'output window, operand 0, single buffered']
    %7 = vsyncpa [#allocation3], 0
    %8 = vsyncpa [#allocation6], 0
    %9 = vsyncpa [#allocation4], 0
    // Predicated region
    $region2: #{tpu_custom_call.1} parent=1 // pred_check
      _
    $region3: #{tpu_custom_call.1} parent=1 // pred_check_branch
      %11 = sbr.rel (0) target = $region5
    $region4: #{tpu_custom_call.1} parent=1 // pred_region
      %s12 = sadd.s32 0, 0
      %s13 = smul.u32 2, %s12
      %s15 = ssub.s32 256, 256
      %16 = vsyncadd [#allocation3], %s15
      %s17 = smul.addr %s13, 128
      %s18 = scalar_lea.hbm %s0, %s17
      %s19 = sshll.u32 [#allocation2], 4
      %s20 = int_to_ptr.vmem [resolvable:$true] %s19
      %25 = dma.hbm_to_vmem [thread:$0]  %s18, 256, %s20, [#allocation3], 128, 128, 8
    $region5: #{tpu_custom_call.1} parent=1 // pred_fallthru
      _
    // Predicated region
    $region6: #{tpu_custom_call.1} parent=1 // pred_check
      _
    $region7: #{tpu_custom_call.1} parent=1 // pred_check_branch
      %27 = sbr.rel (0) target = $region9
    $region8: #{tpu_custom_call.1} parent=1 // pred_region
      %s28 = sadd.s32 0, 0
      %s29 = smul.u32 2, %s28
      %s31 = ssub.s32 256, 256
      %32 = vsyncadd [#allocation6], %s31
      %s33 = smul.addr %s29, 128
      %s34 = scalar_lea.hbm %s1, %s33
      %s35 = sshll.u32 [#allocation5], 4
      %s36 = int_to_ptr.vmem [resolvable:$true] %s35
      %41 = dma.hbm_to_vmem [thread:$0]  %s34, 256, %s36, [#allocation6], 128, 128, 8
    $region9: #{tpu_custom_call.1} parent=1 // pred_fallthru
      _
    // Predicated region
    $region10: #{tpu_custom_call.1} parent=1 // pred_check
      _
    $region11: #{tpu_custom_call.1} parent=1 // pred_check_branch
      %43 = sbr.rel (0) target = $region13
    $region12: #{tpu_custom_call.1} parent=1 // pred_region
      %44 = dma.done [#allocation3], 256
    $region13: #{tpu_custom_call.1} parent=1 // pred_fallthru
      _
    // Predicated region
    $region14: #{tpu_custom_call.1} parent=1 // pred_check
      _
    $region15: #{tpu_custom_call.1} parent=1 // pred_check_branch
      %46 = sbr.rel (0) target = $region17
    $region16: #{tpu_custom_call.1} parent=1 // pred_region
      %47 = dma.done [#allocation6], 256
    $region17: #{tpu_custom_call.1} parent=1 // pred_fallthru
      _
    %s48 = sadd.s32 0, 0
    %s49 = smul.u32 2, %s48
    %s50 = sadd.s32 0, 0
    %s51 = smul.u32 2, %s50
    %p52 = scmp.eq.s32.totalorder 0, 0
    // Predicated region
    $region18: #{tpu_custom_call.1} parent=1 // pred_check
      %p53 = pneg %p52
    $region19: #{tpu_custom_call.1} parent=1 // pred_check_branch
      %55 = sbr.rel (%p53) target = $region21
    $region20: #{tpu_custom_call.1} parent=1 // pred_region
      %56 = vst [vmem:[#allocation7] sm:$0xff] 0.0
      %57 = vst [vmem:[#allocation7 + $0x8] sm:$0xff] 0.0
      %58 = vst [vmem:[#allocation7 + $0x10] sm:$0xff] 0.0
    $region21: #{tpu_custom_call.1} parent=1 // pred_fallthru
      _
    %v59 = vld [vmem:[#allocation2] sm:$0xff]
    %v60 = vld [vmem:[#allocation2 + $0x8] sm:$0xff]
    %v61 = vld [vmem:[#allocation5] sm:$0xff]
    %v62 = vld [vmem:[#allocation5 + $0x8] sm:$0xff]
    %v63 = vmul.f32 %v59, 0.5
    %v64 = vmul.f32 %v60, 0.5
    %v65 = vtanh.pop %v63
    %v66 = vtanh.pop %v64
    %v67 = vmul.f32 %v65, 0.5
    %v68 = vmul.f32 %v66, 0.5
    %v69 = vadd.f32 %v67, 0.5
    %v70 = vadd.f32 %v68, 0.5
    %v71 = vmul.f32 %v69, 1.442695
    %v72 = vpow.pop %v71
    %v73 = vmul.f32 %v70, 1.442695
    %v74 = vpow.pop %v73
    %v75 = vmul.f32 %v69, %v61
    %v76 = vmul.f32 %v70, %v62
    %v77 = vld [vmem:[#allocation7] sm:$0xff]
    %v78 = vadd.f32 %v61, %v62
    %v79 = vadd.f32 %v77, %v78
    %80 = vst [vmem:[#allocation7] sm:$0xff] %v79
    %s81 = scalar_lea.vmem [#allocation7], 8
    %v82 = vld [vmem:[%s81] sm:$0xff]
    %v83 = vadd.f32 %v75, %v76
    %v84 = vadd.f32 %v82, %v83
    %85 = vst [vmem:[%s81] sm:$0xff] %v84
    %s86 = scalar_lea.vmem [#allocation7], 16
    %v87 = vld [vmem:[%s86] sm:$0xff]
    %v88 = vadd.f32 %v72, %v74
    %v89 = vadd.f32 %v87, %v88
    %90 = vst [vmem:[%s86] sm:$0xff] %v89
    // Predicated region
    $region22: #{tpu_custom_call.1} parent=1 // pred_check
      _
    $region23: #{tpu_custom_call.1} parent=1 // pred_check_branch
      %92 = sbr.rel (0) target = $region25
    $region24: #{tpu_custom_call.1} parent=1 // pred_region
      %s94 = ssub.s32 384, 384
      %95 = vsyncadd [#allocation4], %s94
      %s96 = sshll.u32 [#allocation7], 4
      %s97 = int_to_ptr.vmem [resolvable:$true] %s96
      %102 = dma.vmem_to_hbm [thread:$0]  %s97, 384, %s2, [#allocation4], 128, 128, 8
    $region25: #{tpu_custom_call.1} parent=1 // pred_fallthru
      _
    // Predicated region
    $region26: #{tpu_custom_call.1} parent=1 // pred_check
      _
    $region27: #{tpu_custom_call.1} parent=1 // pred_check_branch
      %104 = sbr.rel (0) target = $region29
    $region28: #{tpu_custom_call.1} parent=1 // pred_region
      %105 = dma.done [#allocation4], 384
    $region29: #{tpu_custom_call.1} parent=1 // pred_fallthru
      _
    %106 = vsyncpa [#allocation3], 1
    %107 = vsyncpa [#allocation6], 1
    %108 = vsyncpa [#allocation4], 1

</llo_original>
